<compile_context>
chip_gen: v6e
topology: v6e:2x2x1
jax: 0.10.0
libtpu: 0.0.40
codegen_flags: <defaults>
</compile_context>

<pallas_src>
import jax
import jax.numpy as jnp
from jax.experimental import pallas as pl
from jax.experimental.pallas import tpu as pltpu

ALPHA = 0.5
BETA = 0.5
GAMMA = 2

LANE = 128       # vreg lane width
ACC_SUB = 8      # f32 sublane count -> accumulator sublane dim
_MiB = 1024 * 1024


def _round_up(x, m):
    return ((x + m - 1) // m) * m


def _num_tensorcores():
    """Best-effort TensorCores-per-chip (2 on v7x, 1 on v5e/v6e)."""
    try:
        info = pltpu.get_tpu_info()
        for name in ("num_cores", "core_count", "num_tensorcores",
                     "tensorcore_count", "cores_per_chip"):
            v = getattr(info, name, None)
            if isinstance(v, int) and v >= 1:
                return v
    except Exception:
        pass
    try:
        kind = jax.devices()[0].device_kind.lower()
        if "v7" in kind:
            return 2
    except Exception:
        pass
    return 1


def _vmem_limit_bytes():
    """64 MiB on 128-MiB-VMEM chips (v5e/v6e), ~48 MiB on v7x (64 MiB VMEM)."""
    try:
        cap = int(pltpu.get_tpu_info().vmem_capacity_bytes)
    except Exception:
        cap = 64 * _MiB
    return int(min(64 * _MiB, (cap * 3) // 4))


def _plan_tiles(C, r_min, sub, elem_bytes, target_block_bytes):
    """Pick (c_tile, r_tile, r_pad) for input blocks of shape (1, c_tile, r_tile, 128).

    Preference order (contiguous DMA first):
      1. full (C, r, 128) slab per (split, batch) step if it fits the budget;
      2. tile C with the full r extent (each block is one contiguous HBM region);
      3. single channel larger than the budget: tile r with a large,
         sublane-aligned tile (pad r so the tile divides it evenly when r has
         no decent divisor).
    """
    r_aligned = _round_up(max(r_min, 1), sub)
    row_bytes = LANE * elem_bytes
    chan_bytes = r_aligned * row_bytes

    if C * chan_bytes <= target_block_bytes:
        return C, r_aligned, r_aligned

    if chan_bytes <= target_block_bytes:
        c_tile = 1
        for d in range(1, C + 1):
            if C % d == 0 and d * chan_bytes <= target_block_bytes:
                c_tile = d
        return c_tile, r_aligned, r_aligned

    cap = max(sub, ((target_block_bytes // row_bytes) // sub) * sub)
    best = sub                      # sub always divides r_aligned
    for d in range(sub, cap + 1, sub):
        if r_aligned % d == 0:
            best = d
    # A divisor >= ~cap/4 amortizes per-step overhead with zero extra padding;
    # otherwise use the full cap and pad r up to a multiple of it.
    if best >= max(sub, cap // 4):
        return 1, best, r_aligned
    return 1, cap, _round_up(r_min, cap)


def _ftl_kernel(x_ref, t_ref, ts_ref, tsum_ref, ssum_ref):
    # x_ref / t_ref : (1, c_tile, r_tile, 128) input blocks
    # ts/tsum/ssum  : (1, c_tile, 8, 128) resident per-(split, c-block)
    #                 accumulators (lane- and sublane-dense f32 outputs).
    n = pl.program_id(2)
    r = pl.program_id(3)

    # Zero the accumulator block on the first step of BOTH reduction axes.
    # NOTE: relies on the reduction axes (n, r) being the two innermost grid
    # axes, so every output block sees all of its reduction steps
    # consecutively -- do not reorder the grid.
    @pl.when((n == 0) & (r == 0))
    def _():
        ts_ref[...] = jnp.zeros_like(ts_ref)
        tsum_ref[...] = jnp.zeros_like(tsum_ref)
        ssum_ref[...] = jnp.zeros_like(ssum_ref)

    s = jax.nn.sigmoid(x_ref[...].astype(jnp.float32))   # sigmoid(inputs)
    t = t_ref[...].astype(jnp.float32)

    c_tile, r_tile = s.shape[1], s.shape[2]
    # Split the f32 sublane axis only (layout preserving):
    # (.., r_tile, 128) -> (.., r_tile // 8, 8, 128).  Summing over axis 2 is
    # then pure VPU vreg adds -- no cross-sublane / cross-lane XLU work in the
    # hot loop; the final 8->1 / 128->1 reduces run once in the XLA epilogue.
    s5 = s.reshape(1, c_tile, r_tile // ACC_SUB, ACC_SUB, LANE)
    t5 = t.reshape(1, c_tile, r_tile // ACC_SUB, ACC_SUB, LANE)

    ts_ref[...] += jnp.sum(t5 * s5, axis=2)   # partial sum(t * s)
    tsum_ref[...] += jnp.sum(t5, axis=2)      # partial sum(t)
    ssum_ref[...] += jnp.sum(s5, axis=2)      # partial sum(s)


def focal_tversky_loss(inputs, targets, smooth=1.0, alpha=ALPHA, beta=BETA,
                       gamma=GAMMA, cast_targets_bf16=True,
                       target_block_bytes=4 * _MiB):
    """inputs, targets: NCHW. Returns per-channel focal Tversky loss, shape [C]."""
    N, C, H, W = inputs.shape
    assert targets.shape == inputs.shape
    hw = H * W

    # Binary masks are exactly representable in bf16 -> halve the targets'
    # HBM stream.  Logits are never downcast here (pass bf16 `inputs` for an
    # additional ~2x bandwidth win if acceptable).
    t_in = targets.astype(jnp.bfloat16) if cast_targets_bf16 else targets

    x_bytes = jnp.dtype(inputs.dtype).itemsize
    t_bytes = jnp.dtype(t_in.dtype).itemsize
    # bf16 packs sublanes in pairs -> align r tiles to 16 when any stream is
    # 16-bit, else 8 (avoids per-block sublane repack).
    sub = 16 if min(x_bytes, t_bytes) < 4 else 8

    r_min = pl.cdiv(hw, LANE)
    c_tile, r_tile, r_pad = _plan_tiles(
        C, r_min, sub, max(x_bytes, t_bytes), target_block_bytes)

    # Split the batch across the leading "parallel" axis only on 2-TensorCore
    # chips (v7x); on v5e/v6e it is just a serial loop with extra init work.
    num_splits = 2 if (_num_tensorcores() >= 2 and N >= 2 and N % 2 == 0) else 1
    n_per_split = N // num_splits

    # Free reshape (no transpose): NCHW -> (N, C, H*W); pad the flat spatial
    # axis to r_pad * 128.  Padded logits are -inf (sigmoid == 0) and padded
    # targets are 0, so padding contributes exactly nothing to any sum.
    x = inputs.reshape(N, C, hw)
    t = t_in.reshape(N, C, hw)
    pad = r_pad * LANE - hw
    if pad:
        x = jnp.pad(x, ((0, 0), (0, 0), (0, pad)),
                    constant_values=float("-inf"))
        t = jnp.pad(t, ((0, 0), (0, 0), (0, pad)))
    x = x.reshape(N, C, r_pad, LANE)
    t = t.reshape(N, C, r_pad, LANE)

    # Grid order (p, c, n, r): output blocks are indexed by (p, c) and the
    # reduction axes (n, r) are innermost, so each accumulator block sees all
    # of its reduction steps consecutively.
    grid = (num_splits, C // c_tile, n_per_split, r_pad // r_tile)

    in_map = lambda p, c, n, r: (p * n_per_split + n, c, r, 0)
    out_map = lambda p, c, n, r: (p, c, 0, 0)

    in_spec = pl.BlockSpec((1, c_tile, r_tile, LANE), in_map)
    part_shape = jax.ShapeDtypeStruct((num_splits, C, ACC_SUB, LANE),
                                      jnp.float32)
    part_spec = pl.BlockSpec((1, c_tile, ACC_SUB, LANE), out_map)

    ts_p, tsum_p, ssum_p = pl.pallas_call(
        _ftl_kernel,
        out_shape=(part_shape, part_shape, part_shape),
        grid_spec=pltpu.PrefetchScalarGridSpec(
            num_scalar_prefetch=0,
            grid=grid,
            in_specs=[in_spec, in_spec],
            out_specs=[part_spec, part_spec, part_spec],
        ),
        compiler_params=pltpu.CompilerParams(
            dimension_semantics=("parallel", "parallel",
                                 "arbitrary", "arbitrary"),
            vmem_limit_bytes=_vmem_limit_bytes(),
        ),
    )(x, t)

    # Tiny cross-split / cross-sublane / cross-lane reduce + Tversky formula
    # in plain XLA.  FP/FN are recovered algebraically (sum(s) - TP and
    # sum(t) - TP); this is exact in real arithmetic and within a few ULPs of
    # the direct products even for large, near-saturated tensors.
    tp = jnp.sum(ts_p, axis=(0, 2, 3))
    t_sum = jnp.sum(tsum_p, axis=(0, 2, 3))
    s_sum = jnp.sum(ssum_p, axis=(0, 2, 3))
    fn = t_sum - tp          # sum(t * (1 - s))
    fp = s_sum - tp          # sum((1 - t) * s)
    tversky = (tp + smooth) / (tp + alpha * fp + beta * fn + smooth)
    return (1.0 - tversky) ** gamma


def _reference(inputs, targets, smooth=1.0, alpha=ALPHA, beta=BETA, gamma=GAMMA):
    s = jax.nn.sigmoid(inputs.astype(jnp.float32))
    t = targets.astype(jnp.float32)
    tp = jnp.sum(t * s, axis=(0, 2, 3))
    fn = jnp.sum(t * (1.0 - s), axis=(0, 2, 3))
    fp = jnp.sum((1.0 - t) * s, axis=(0, 2, 3))
    tversky = (tp + smooth) / (tp + alpha * fp + beta * fn + smooth)
    return (1.0 - tversky) ** gamma


if __name__ == "__main__":
    key = jax.random.PRNGKey(0)
    k1, k2 = jax.random.split(key)
    N, C, H, W = 2, 4, 16, 16
    inputs = jax.random.normal(k1, (N, C, H, W), dtype=jnp.float32)    # logits
    targets = (jax.random.uniform(k2, (N, C, H, W)) > 0.5).astype(jnp.float32)

    out = focal_tversky_loss(inputs, targets)
    out = jax.block_until_ready(out)

    ref = _reference(inputs, targets)
    assert out.shape == (C,)
    assert jnp.allclose(out, ref, atol=1e-5, rtol=1e-5), (out, ref)
    print("KERNEL_OK")
</pallas_src>

<mosaic_0001>
module attributes {stable_mosaic.version = 11 : i64} {
  func.func @_ftl_kernel(%arg0: i32, %arg1: i32, %arg2: i32, %arg3: i32, %arg4: memref<1x4x16x128xf32, #tpu.memory_space<vmem>>, %arg5: memref<1x4x16x128xbf16, #tpu.memory_space<vmem>>, %arg6: memref<1x4x8x128xf32, #tpu.memory_space<vmem>>, %arg7: memref<1x4x8x128xf32, #tpu.memory_space<vmem>>, %arg8: memref<1x4x8x128xf32, #tpu.memory_space<vmem>>) attributes {dimension_semantics = [#tpu.dimension_semantics<parallel>, #tpu.dimension_semantics<parallel>, #tpu.dimension_semantics<arbitrary>, #tpu.dimension_semantics<arbitrary>], iteration_bounds = array<i64: 1, 1, 2, 1>, scalar_prefetch = 0 : i64, scratch_operands = 0 : i64, tpu.core_type = #tpu.core_type<tc>, window_params = [{transform_indices = @transform_0, window_bounds = array<i64: 1, 4, 16, 128>}, {transform_indices = @transform_1, window_bounds = array<i64: 1, 4, 16, 128>}, {transform_indices = @transform_2, window_bounds = array<i64: 1, 4, 8, 128>}, {transform_indices = @transform_3, window_bounds = array<i64: 1, 4, 8, 128>}, {transform_indices = @transform_4, window_bounds = array<i64: 1, 4, 8, 128>}]} {
    %c0_i32 = arith.constant 0 : i32
    %0 = arith.cmpi eq, %arg2, %c0_i32 : i32
    %c0_i32_0 = arith.constant 0 : i32
    %1 = arith.cmpi eq, %arg3, %c0_i32_0 : i32
    %2 = arith.andi %0, %1 : i1
    %3 = arith.extui %2 : i1 to i32
    %c0_i32_1 = arith.constant 0 : i32
    %4 = arith.cmpi ne, %3, %c0_i32_1 : i32
    scf.if %4 {
      %cst_36 = arith.constant 0.000000e+00 : f32
      %28 = vector.broadcast %cst_36 : f32 to vector<1x4x8x128xf32>
      %c0_37 = arith.constant 0 : index
      %c0_38 = arith.constant 0 : index
      %c0_39 = arith.constant 0 : index
      %c0_40 = arith.constant 0 : index
      %29 = vector.load %arg6[%c0_37, %c0_38, %c0_39, %c0_40] : memref<1x4x8x128xf32, #tpu.memory_space<vmem>>, vector<1x4x8x128xf32>
      tpu.vector_store %arg6[%c0_37, %c0_38, %c0_39, %c0_40], %28 {strides = array<i32>} : memref<1x4x8x128xf32, #tpu.memory_space<vmem>>, vector<1x4x8x128xf32>,
      %cst_41 = arith.constant 0.000000e+00 : f32
      %30 = vector.broadcast %cst_41 : f32 to vector<1x4x8x128xf32>
      %c0_42 = arith.constant 0 : index
      %c0_43 = arith.constant 0 : index
      %c0_44 = arith.constant 0 : index
      %c0_45 = arith.constant 0 : index
      %31 = vector.load %arg7[%c0_42, %c0_43, %c0_44, %c0_45] : memref<1x4x8x128xf32, #tpu.memory_space<vmem>>, vector<1x4x8x128xf32>
      tpu.vector_store %arg7[%c0_42, %c0_43, %c0_44, %c0_45], %30 {strides = array<i32>} : memref<1x4x8x128xf32, #tpu.memory_space<vmem>>, vector<1x4x8x128xf32>,
      %cst_46 = arith.constant 0.000000e+00 : f32
      %32 = vector.broadcast %cst_46 : f32 to vector<1x4x8x128xf32>
      %c0_47 = arith.constant 0 : index
      %c0_48 = arith.constant 0 : index
      %c0_49 = arith.constant 0 : index
      %c0_50 = arith.constant 0 : index
      %33 = vector.load %arg8[%c0_47, %c0_48, %c0_49, %c0_50] : memref<1x4x8x128xf32, #tpu.memory_space<vmem>>, vector<1x4x8x128xf32>
      tpu.vector_store %arg8[%c0_47, %c0_48, %c0_49, %c0_50], %32 {strides = array<i32>} : memref<1x4x8x128xf32, #tpu.memory_space<vmem>>, vector<1x4x8x128xf32>,
    } else {
    }
    %c0 = arith.constant 0 : index
    %c0_2 = arith.constant 0 : index
    %c0_3 = arith.constant 0 : index
    %c0_4 = arith.constant 0 : index
    %5 = vector.load %arg4[%c0, %c0_2, %c0_3, %c0_4] : memref<1x4x16x128xf32, #tpu.memory_space<vmem>>, vector<1x4x16x128xf32>
    %6 = arith.negf %5 : vector<1x4x16x128xf32>
    %7 = math.exp %6 : vector<1x4x16x128xf32>
    %cst = arith.constant 1.000000e+00 : f32
    %8 = vector.broadcast %cst : f32 to vector<1x4x16x128xf32>
    %9 = arith.addf %8, %7 : vector<1x4x16x128xf32>
    %10 = arith.divf %8, %9 : vector<1x4x16x128xf32>
    %c0_5 = arith.constant 0 : index
    %c0_6 = arith.constant 0 : index
    %c0_7 = arith.constant 0 : index
    %c0_8 = arith.constant 0 : index
    %11 = vector.load %arg5[%c0_5, %c0_6, %c0_7, %c0_8] : memref<1x4x16x128xbf16, #tpu.memory_space<vmem>>, vector<1x4x16x128xbf16>
    %12 = arith.extf %11 : vector<1x4x16x128xbf16> to vector<1x4x16x128xf32>
    %13 = vector.shape_cast %10 : vector<1x4x16x128xf32> to vector<1x4x2x8x128xf32>
    %14 = vector.shape_cast %12 : vector<1x4x16x128xf32> to vector<1x4x2x8x128xf32>
    %c0_9 = arith.constant 0 : index
    %c0_10 = arith.constant 0 : index
    %c0_11 = arith.constant 0 : index
    %c0_12 = arith.constant 0 : index
    %15 = vector.load %arg6[%c0_9, %c0_10, %c0_11, %c0_12] : memref<1x4x8x128xf32, #tpu.memory_space<vmem>>, vector<1x4x8x128xf32>
    %16 = arith.mulf %14, %13 : vector<1x4x2x8x128xf32>
    %cst_13 = arith.constant dense<0.000000e+00> : vector<1x4x8x128xf32>
    %17 = vector.multi_reduction <add>, %16, %cst_13 [2] : vector<1x4x2x8x128xf32> to vector<1x4x8x128xf32>
    %18 = arith.addf %15, %17 : vector<1x4x8x128xf32>
    %c0_14 = arith.constant 0 : index
    %c0_15 = arith.constant 0 : index
    %c0_16 = arith.constant 0 : index
    %c0_17 = arith.constant 0 : index
    %19 = vector.load %arg6[%c0_14, %c0_15, %c0_16, %c0_17] : memref<1x4x8x128xf32, #tpu.memory_space<vmem>>, vector<1x4x8x128xf32>
    tpu.vector_store %arg6[%c0_14, %c0_15, %c0_16, %c0_17], %18 {strides = array<i32>} : memref<1x4x8x128xf32, #tpu.memory_space<vmem>>, vector<1x4x8x128xf32>,
    %c0_18 = arith.constant 0 : index
    %c0_19 = arith.constant 0 : index
    %c0_20 = arith.constant 0 : index
    %c0_21 = arith.constant 0 : index
    %20 = vector.load %arg7[%c0_18, %c0_19, %c0_20, %c0_21] : memref<1x4x8x128xf32, #tpu.memory_space<vmem>>, vector<1x4x8x128xf32>
    %cst_22 = arith.constant dense<0.000000e+00> : vector<1x4x8x128xf32>
    %21 = vector.multi_reduction <add>, %14, %cst_22 [2] : vector<1x4x2x8x128xf32> to vector<1x4x8x128xf32>
    %22 = arith.addf %20, %21 : vector<1x4x8x128xf32>
    %c0_23 = arith.constant 0 : index
    %c0_24 = arith.constant 0 : index
    %c0_25 = arith.constant 0 : index
    %c0_26 = arith.constant 0 : index
    %23 = vector.load %arg7[%c0_23, %c0_24, %c0_25, %c0_26] : memref<1x4x8x128xf32, #tpu.memory_space<vmem>>, vector<1x4x8x128xf32>
    tpu.vector_store %arg7[%c0_23, %c0_24, %c0_25, %c0_26], %22 {strides = array<i32>} : memref<1x4x8x128xf32, #tpu.memory_space<vmem>>, vector<1x4x8x128xf32>,
    %c0_27 = arith.constant 0 : index
    %c0_28 = arith.constant 0 : index
    %c0_29 = arith.constant 0 : index
    %c0_30 = arith.constant 0 : index
    %24 = vector.load %arg8[%c0_27, %c0_28, %c0_29, %c0_30] : memref<1x4x8x128xf32, #tpu.memory_space<vmem>>, vector<1x4x8x128xf32>
    %cst_31 = arith.constant dense<0.000000e+00> : vector<1x4x8x128xf32>
    %25 = vector.multi_reduction <add>, %13, %cst_31 [2] : vector<1x4x2x8x128xf32> to vector<1x4x8x128xf32>
    %26 = arith.addf %24, %25 : vector<1x4x8x128xf32>
    %c0_32 = arith.constant 0 : index
    %c0_33 = arith.constant 0 : index
    %c0_34 = arith.constant 0 : index
    %c0_35 = arith.constant 0 : index
    %27 = vector.load %arg8[%c0_32, %c0_33, %c0_34, %c0_35] : memref<1x4x8x128xf32, #tpu.memory_space<vmem>>, vector<1x4x8x128xf32>
    tpu.vector_store %arg8[%c0_32, %c0_33, %c0_34, %c0_35], %26 {strides = array<i32>} : memref<1x4x8x128xf32, #tpu.memory_space<vmem>>, vector<1x4x8x128xf32>,
    return
  }
  func.func @transform_0(%arg0: i32, %arg1: i32, %arg2: i32, %arg3: i32) -> (i32, i32, i32, i32) {
    %c2_i32 = arith.constant 2 : i32
    %0 = arith.muli %arg0, %c2_i32 : i32
    %1 = arith.addi %0, %arg2 : i32
    %c0_i32 = arith.constant 0 : i32
    %c0_i32_0 = arith.constant 0 : i32
    return %1, %arg1, %arg3, %c0_i32 : i32, i32, i32, i32
  }
  func.func @transform_1(%arg0: i32, %arg1: i32, %arg2: i32, %arg3: i32) -> (i32, i32, i32, i32) {
    %c2_i32 = arith.constant 2 : i32
    %0 = arith.muli %arg0, %c2_i32 : i32
    %1 = arith.addi %0, %arg2 : i32
    %c0_i32 = arith.constant 0 : i32
    %c0_i32_0 = arith.constant 0 : i32
    return %1, %arg1, %arg3, %c0_i32 : i32, i32, i32, i32
  }
  func.func @transform_2(%arg0: i32, %arg1: i32, %arg2: i32, %arg3: i32) -> (i32, i32, i32, i32) {
    %c0_i32 = arith.constant 0 : i32
    %c0_i32_0 = arith.constant 0 : i32
    %c0_i32_1 = arith.constant 0 : i32
    return %arg0, %arg1, %c0_i32, %c0_i32_0 : i32, i32, i32, i32
  }
  func.func @transform_3(%arg0: i32, %arg1: i32, %arg2: i32, %arg3: i32) -> (i32, i32, i32, i32) {
    %c0_i32 = arith.constant 0 : i32
    %c0_i32_0 = arith.constant 0 : i32
    %c0_i32_1 = arith.constant 0 : i32
    return %arg0, %arg1, %c0_i32, %c0_i32_0 : i32, i32, i32, i32
  }
  func.func @transform_4(%arg0: i32, %arg1: i32, %arg2: i32, %arg3: i32) -> (i32, i32, i32, i32) {
    %c0_i32 = arith.constant 0 : i32
    %c0_i32_0 = arith.constant 0 : i32
    %c0_i32_1 = arith.constant 0 : i32
    return %arg0, %arg1, %c0_i32, %c0_i32_0 : i32, i32, i32, i32
  }
}

</mosaic_0001>

<llo_original>
// kernel: tpu_custom_call.1
$region0: #{tpu_custom_call.1}
  #allocation0 [shape = 'u32[]', space=smem, size = 0x4, offset = 0x4, fixed_abs, tag = 'smem constant byte address 0x4 - core index']
  #allocation1 [shape = 'u32[144,128]{1,0:T(1,128)}', space=vmem, size = 0x12000, scoped, tag = 'internal scratch']
  %s0 = inlined_call_operand.hbm [shape: f32[2,4,16,128], index: 0, kind: input, shape index: {}]
  %s1 = inlined_call_operand.hbm [shape: bf16[2,4,16,128], index: 1, kind: input, shape index: {}]
  %s2 = inlined_call_operand.hbm [shape: f32[1,4,8,128], index: 2, kind: output, shape index: {0}]
  %s3 = inlined_call_operand.hbm [shape: f32[1,4,8,128], index: 3, kind: output, shape index: {1}]
  %s4 = inlined_call_operand.hbm [shape: f32[1,4,8,128], index: 4, kind: output, shape index: {2}]
  %5 = xla_tuple %s2, %s3, %s4
  %s6 = sld [smem:[#allocation0]]
  $region69: #{tpu_custom_call.1} parent=0
    _
  %s8 = ssub.s32 1, %s6
  %s9 = scalar_select 0, %s8, %s6
  $region1: #{tpu_custom_call.1} parent=0
    #allocation2 [shape = 'u8[65536]{0}', space=vmem, size = 0x10000, scoped, tag = 'input window, operand 0']
    #allocation3 [shape = 's32[2]{0}', space=sflag, size = 0x8, scoped, tag = 'scoped memory for tpu_custom_call.1']
    #allocation4 [shape = 's32[2]{0}', space=sflag, size = 0x8, scoped, tag = 'scoped memory for tpu_custom_call.1']
    #allocation5 [shape = 'u8[32768]{0}', space=vmem, size = 0x8000, scoped, tag = 'input window, operand 1']
    #allocation6 [shape = 's32[2]{0}', space=sflag, size = 0x8, scoped, tag = 'scoped memory for tpu_custom_call.1']
    #allocation7 [shape = 'u8[16384]{0}', space=vmem, size = 0x4000, scoped, tag = 'output window, operand 0, single buffered']
    #allocation8 [shape = 'u8[16384]{0}', space=vmem, size = 0x4000, scoped, tag = 'output window, operand 1, single buffered']
    #allocation9 [shape = 's32[1]{0}', space=sflag, size = 0x4, scoped, tag = 'scoped memory for tpu_custom_call.1']
    #allocation10 [shape = 'u8[16384]{0}', space=vmem, size = 0x4000, scoped, tag = 'output window, operand 2, single buffered']
    %10 = vsyncpa [#allocation3], 0
    %s11 = scalar_lea.sflag [#allocation3], 1
    %12 = vsyncpa %s11, 0
    %13 = vsyncpa [#allocation6], 0
    %s14 = scalar_lea.sflag [#allocation6], 1
    %15 = vsyncpa %s14, 0
    %16 = vsyncpa [#allocation4], 0
    %17 = vsyncpa [#allocation9], 0
    loop: start=0, step=1, limit=4
    $region2: #{tpu_custom_call.1} parent=1 // loop_pre_header
      _
    $region3: #{tpu_custom_call.1} parent=1 // loop_header
      %s19 = sphi 0, %s23
      %p20 = scmp.ge.s32.totalorder %s19, 4
      %s26 = sphi 0, %s52
      %s27 = sphi 0, %s48
      %s28 = sphi 0, %s44
      %s29 = sphi 0, %s40
      %s30 = sphi 0, %s26
      %s31 = sphi 0, %s27
      %s32 = sphi 0, %s28
      %s33 = sphi 0, %s29
      %s34 = sphi 0, %s30
      %s35 = sphi 0, %s31
      %s36 = sphi 0, %s32
      %s37 = sphi 0, %s33
      %s63 = sphi 0, %s65
      %s66 = sphi 0, %s63
      %s67 = sphi 0, %s66
      %s83 = sphi 0, %s67
      %s97 = sphi 0, %s99
      %s100 = sphi 0, %s97
      %s101 = sphi 0, %s100
      %s117 = sphi 0, %s101
      %s125 = sphi 0, %s127
      %s128 = sphi 0, %s125
      %s129 = sphi 0, %s128
      %s145 = sphi 0, %s129
      %s153 = sphi 0, %s155
      %s156 = sphi 0, %s153
      %s157 = sphi 0, %s156
      %s173 = sphi 0, %s157
      %s181 = sphi 0, %s183
      %s184 = sphi 0, %s181
      %s185 = sphi 0, %s184
      %s201 = sphi 0, %s185
    $region4: #{tpu_custom_call.1} parent=1 // loop_header_branch
      %22 = sbr.rel (%p20) target = $region8
    $region5: #{tpu_custom_call.1} parent=1 // loop_body
      %s24 = ssub.s32 %s19, 1
      %s25 = ssub.s32 %s19, 2
      %s38 = sadd.s32 1, %s29
      %p39 = scmp.ge.s32.totalorder %s38, 1
      %s40 = scalar_select %p39, 0, %s38
      %s41 = sadd.s32 1, %s28
      %s42 = scalar_select %p39, %s41, %s28
      %p43 = scmp.ge.s32.totalorder %s42, 2
      %s44 = scalar_select %p43, 0, %s42
      %s45 = sadd.s32 1, %s27
      %s46 = scalar_select %p43, %s45, %s27
      %p47 = scmp.ge.s32.totalorder %s46, 1
      %s48 = scalar_select %p47, 0, %s46
      %s49 = sadd.s32 1, %s26
      %s50 = scalar_select %p47, %s49, %s26
      %p51 = scmp.ge.s32.totalorder %s50, 1
      %s52 = scalar_select %p51, 0, %s50
      %s53 = smul.u32 %s26, 2
      %s54 = sadd.s32 %s53, %s28
      %s55 = smul.u32 %s52, 2
      %s56 = sadd.s32 %s55, %s44
      %s57 = ssub.s32 %s54, %s56
      %s58 = ssub.s32 %s27, %s48
      %s59 = sor.u32 %s57, %s58
      %s60 = ssub.s32 %s29, %s40
      %s61 = sor.u32 %s59, %s60
      %p62 = scmp.eq.s32.totalorder %s61, 0
      %s64 = sadd.s32 %s63, 1
      %s65 = scalar_select %p62, %s63, %s64
      %p68 = pneg %p62
      %p69 = scmp.eq.s32.totalorder %s19, 1
      %p70 = por %p68, %p69
      %p71 = scmp.ne.s32.totalorder %s63, %s66
      %p72 = scmp.eq.s32.totalorder %s19, 0
      %p73 = por %p71, %p72
      %p74 = scmp.ne.s32.totalorder %s63, %s66
      %p75 = scmp.eq.s32.totalorder %s24, 1
      %p76 = por %p74, %p75
      %p77 = scmp.ne.s32.totalorder %s66, %s67
      %p78 = scmp.eq.s32.totalorder %s24, 0
      %p79 = por %p77, %p78
      %p80 = scmp.ne.s32.totalorder %s66, %s67
      %p81 = scmp.eq.s32.totalorder %s25, 1
      %p82 = por %p80, %p81
      %p84 = scmp.ne.s32.totalorder %s67, %s83
      %p85 = scmp.eq.s32.totalorder %s25, 0
      %p86 = por %p84, %p85
      %s87 = smul.u32 %s26, 2
      %s88 = sadd.s32 %s87, %s28
      %s89 = smul.u32 %s52, 2
      %s90 = sadd.s32 %s89, %s44
      %s91 = ssub.s32 %s88, %s90
      %s92 = ssub.s32 %s27, %s48
      %s93 = sor.u32 %s91, %s92
      %s94 = ssub.s32 %s29, %s40
      %s95 = sor.u32 %s93, %s94
      %p96 = scmp.eq.s32.totalorder %s95, 0
      %s98 = sadd.s32 %s97, 1
      %s99 = scalar_select %p96, %s97, %s98
      %p102 = pneg %p96
      %p103 = scmp.eq.s32.totalorder %s19, 1
      %p104 = por %p102, %p103
      %p105 = scmp.ne.s32.totalorder %s97, %s100
      %p106 = scmp.eq.s32.totalorder %s19, 0
      %p107 = por %p105, %p106
      %p108 = scmp.ne.s32.totalorder %s97, %s100
      %p109 = scmp.eq.s32.totalorder %s24, 1
      %p110 = por %p108, %p109
      %p111 = scmp.ne.s32.totalorder %s100, %s101
      %p112 = scmp.eq.s32.totalorder %s24, 0
      %p113 = por %p111, %p112
      %p114 = scmp.ne.s32.totalorder %s100, %s101
      %p115 = scmp.eq.s32.totalorder %s25, 1
      %p116 = por %p114, %p115
      %p118 = scmp.ne.s32.totalorder %s101, %s117
      %p119 = scmp.eq.s32.totalorder %s25, 0
      %p120 = por %p118, %p119
      %s121 = ssub.s32 %s26, %s52
      %s122 = ssub.s32 %s27, %s48
      %s123 = sor.u32 %s121, %s122
      %p124 = scmp.eq.s32.totalorder %s123, 0
      %s126 = sadd.s32 %s125, 1
      %s127 = scalar_select %p124, %s125, %s126
      %p130 = pneg %p124
      %p131 = scmp.eq.s32.totalorder %s19, 1
      %p132 = por %p130, %p131
      %p133 = scmp.ne.s32.totalorder %s125, %s128
      %p134 = scmp.eq.s32.totalorder %s19, 0
      %p135 = por %p133, %p134
      %p136 = scmp.ne.s32.totalorder %s125, %s128
      %p137 = scmp.eq.s32.totalorder %s24, 1
      %p138 = por %p136, %p137
      %p139 = scmp.ne.s32.totalorder %s128, %s129
      %p140 = scmp.eq.s32.totalorder %s24, 0
      %p141 = por %p139, %p140
      %p142 = scmp.ne.s32.totalorder %s128, %s129
      %p143 = scmp.eq.s32.totalorder %s25, 1
      %p144 = por %p142, %p143
      %p146 = scmp.ne.s32.totalorder %s129, %s145
      %p147 = scmp.eq.s32.totalorder %s25, 0
      %p148 = por %p146, %p147
      %s149 = ssub.s32 %s26, %s52
      %s150 = ssub.s32 %s27, %s48
      %s151 = sor.u32 %s149, %s150
      %p152 = scmp.eq.s32.totalorder %s151, 0
      %s154 = sadd.s32 %s153, 1
      %s155 = scalar_select %p152, %s153, %s154
      %p158 = pneg %p152
      %p159 = scmp.eq.s32.totalorder %s19, 1
      %p160 = por %p158, %p159
      %p161 = scmp.ne.s32.totalorder %s153, %s156
      %p162 = scmp.eq.s32.totalorder %s19, 0
      %p163 = por %p161, %p162
      %p164 = scmp.ne.s32.totalorder %s153, %s156
      %p165 = scmp.eq.s32.totalorder %s24, 1
      %p166 = por %p164, %p165
      %p167 = scmp.ne.s32.totalorder %s156, %s157
      %p168 = scmp.eq.s32.totalorder %s24, 0
      %p169 = por %p167, %p168
      %p170 = scmp.ne.s32.totalorder %s156, %s157
      %p171 = scmp.eq.s32.totalorder %s25, 1
      %p172 = por %p170, %p171
      %p174 = scmp.ne.s32.totalorder %s157, %s173
      %p175 = scmp.eq.s32.totalorder %s25, 0
      %p176 = por %p174, %p175
      %s177 = ssub.s32 %s26, %s52
      %s178 = ssub.s32 %s27, %s48
      %s179 = sor.u32 %s177, %s178
      %p180 = scmp.eq.s32.totalorder %s179, 0
      %s182 = sadd.s32 %s181, 1
      %s183 = scalar_select %p180, %s181, %s182
      %p186 = pneg %p180
      %p187 = scmp.eq.s32.totalorder %s19, 1
      %p188 = por %p186, %p187
      %p189 = scmp.ne.s32.totalorder %s181, %s184
      %p190 = scmp.eq.s32.totalorder %s19, 0
      %p191 = por %p189, %p190
      %p192 = scmp.ne.s32.totalorder %s181, %s184
      %p193 = scmp.eq.s32.totalorder %s24, 1
      %p194 = por %p192, %p193
      %p195 = scmp.ne.s32.totalorder %s184, %s185
      %p196 = scmp.eq.s32.totalorder %s24, 0
      %p197 = por %p195, %p196
      %p198 = scmp.ne.s32.totalorder %s184, %s185
      %p199 = scmp.eq.s32.totalorder %s25, 1
      %p200 = por %p198, %p199
      %p202 = scmp.ne.s32.totalorder %s185, %s201
      %p203 = scmp.eq.s32.totalorder %s25, 0
      %p204 = por %p202, %p203
      %p205 = scmp.le.s32.totalorder 1, %s19
      %p206 = scmp.lt.s32.totalorder %s19, 3
      %p207 = pnand %p205, %p206
      %p208 = pneg %p207
      // Predicated region
      $region9: #{tpu_custom_call.1} parent=5 // pred_check
        _
      $region10: #{tpu_custom_call.1} parent=5 // pred_check_branch
        %210 = sbr.rel (%p207) target = $region12
      $region11: #{tpu_custom_call.1} parent=5 // pred_region
        %s211 = ssub.s32 %s19, 1
      $region12: #{tpu_custom_call.1} parent=5 // pred_fallthru
        _
      %p212 = scmp.lt.s32.totalorder %s19, 2
      // Predicated region
      $region13: #{tpu_custom_call.1} parent=5 // pred_check
        %p213 = pneg %p212
      $region14: #{tpu_custom_call.1} parent=5 // pred_check_branch
        %215 = sbr.rel (%p213) target = $region16
      $region15: #{tpu_custom_call.1} parent=5 // pred_region
        // Predicated region
        $region17: #{tpu_custom_call.1} parent=15 // pred_check
          %p216 = pneg %p73
        $region18: #{tpu_custom_call.1} parent=15 // pred_check_branch
          %218 = sbr.rel (%p216) target = $region20
        $region19: #{tpu_custom_call.1} parent=15 // pred_region
          %s219 = sand.u32 %s63, 1
          %s220 = scalar_lea.sflag [#allocation3], %s219
          %s221 = sand.u32 %s63, 1
          %s222 = smul.addr %s221, 64
          %s223 = scalar_lea.vmem [#allocation2], %s222
          %s224 = smul.u32 %s26, 2
          %s225 = sadd.s32 %s224, %s28
          %s226 = smul.u32 4, %s27
          %s227 = smul.u32 2, %s29
          %s229 = ssub.s32 1024, 1024
          %230 = vsyncadd %s220, %s229
          %s231 = smul.addr %s226, 2
          %s232 = sadd.s32 %s227, %s231
          %s233 = smul.addr %s225, 8
          %s234 = sadd.s32 %s232, %s233
          %s235 = smul.addr %s234, 128
          %s236 = scalar_lea.hbm %s0, %s235
          %s237 = sshll.u32 %s223, 4
          %s238 = int_to_ptr.vmem [resolvable:$true] %s237
          %243 = dma.hbm_to_vmem [thread:$0]  %s236, 1024, %s238, %s220, 128, 128, 8
        $region20: #{tpu_custom_call.1} parent=15 // pred_fallthru
          _
        // Predicated region
        $region21: #{tpu_custom_call.1} parent=15 // pred_check
          %p244 = pneg %p107
        $region22: #{tpu_custom_call.1} parent=15 // pred_check_branch
          %246 = sbr.rel (%p244) target = $region24
        $region23: #{tpu_custom_call.1} parent=15 // pred_region
          %s247 = sand.u32 %s97, 1
          %s248 = scalar_lea.sflag [#allocation6], %s247
          %s249 = sand.u32 %s97, 1
          %s250 = smul.addr %s249, 32
          %s251 = scalar_lea.vmem [#allocation5], %s250
          %s252 = smul.u32 %s26, 2
          %s253 = sadd.s32 %s252, %s28
          %s254 = smul.u32 4, %s27
          %s255 = smul.u32 2, %s29
          %s257 = ssub.s32 512, 512
          %258 = vsyncadd %s248, %s257
          %s259 = smul.addr %s254, 2
          %s260 = sadd.s32 %s255, %s259
          %s261 = smul.addr %s253, 8
          %s262 = sadd.s32 %s260, %s261
          %s263 = smul.addr %s262, 64
          %s264 = scalar_lea.hbm %s1, %s263
          %s265 = sshll.u32 %s251, 4
          %s266 = int_to_ptr.vmem [resolvable:$true] %s265
          %271 = dma.hbm_to_vmem [thread:$0]  %s264, 512, %s266, %s248, 64, 64, 4
        $region24: #{tpu_custom_call.1} parent=15 // pred_fallthru
          _
      $region16: #{tpu_custom_call.1} parent=5 // pred_fallthru
        _
      %p272 = scmp.le.s32.totalorder 1, %s19
      %p273 = scmp.lt.s32.totalorder %s19, 3
      %p274 = pnand %p272, %p273
      %p275 = pneg %p274
      // Predicated region
      $region25: #{tpu_custom_call.1} parent=5 // pred_check
        _
      $region26: #{tpu_custom_call.1} parent=5 // pred_check_branch
        %277 = sbr.rel (%p274) target = $region28
      $region27: #{tpu_custom_call.1} parent=5 // pred_region
        %s278 = ssub.s32 %s19, 1
        %s279 = sand.u32 %s66, 1
        %s280 = scalar_lea.sflag [#allocation3], %s279
        %s281 = sand.u32 %s66, 1
        %s282 = smul.addr %s281, 64
        %s283 = scalar_lea.vmem [#allocation2], %s282
        // Predicated region
        $region29: #{tpu_custom_call.1} parent=27 // pred_check
          %p284 = pneg %p79
        $region30: #{tpu_custom_call.1} parent=27 // pred_check_branch
          %286 = sbr.rel (%p284) target = $region32
        $region31: #{tpu_custom_call.1} parent=27 // pred_region
          %287 = dma.done %s280, 1024
        $region32: #{tpu_custom_call.1} parent=27 // pred_fallthru
          _
        %s288 = sand.u32 %s100, 1
        %s289 = scalar_lea.sflag [#allocation6], %s288
        %s290 = sand.u32 %s100, 1
        %s291 = smul.addr %s290, 32
        %s292 = scalar_lea.vmem [#allocation5], %s291
        // Predicated region
        $region33: #{tpu_custom_call.1} parent=27 // pred_check
          %p293 = pneg %p113
        $region34: #{tpu_custom_call.1} parent=27 // pred_check_branch
          %295 = sbr.rel (%p293) target = $region36
        $region35: #{tpu_custom_call.1} parent=27 // pred_region
          %296 = dma.done %s289, 512
        $region36: #{tpu_custom_call.1} parent=27 // pred_fallthru
          _
        %s297 = sand.u32 %s66, 1
        %s298 = scalar_lea.sflag [#allocation3], %s297
        %s299 = sand.u32 %s66, 1
        %s300 = smul.addr %s299, 64
        %s301 = scalar_lea.vmem [#allocation2], %s300
        %p302 = pneg %p79
        %p303 = pneg %p76
        %s304 = sand.u32 %s100, 1
        %s305 = scalar_lea.sflag [#allocation6], %s304
        %s306 = sand.u32 %s100, 1
        %s307 = smul.addr %s306, 32
        %s308 = scalar_lea.vmem [#allocation5], %s307
        %p309 = pneg %p113
        %p310 = pneg %p110
        %p311 = pneg %p141
        %p312 = pneg %p138
        %p313 = pneg %p169
        %p314 = pneg %p166
        %p315 = pneg %p197
        %p316 = pneg %p194
        %s317 = smul.u32 %s30, 2
        %s318 = sadd.s32 %s317, %s32
        %s319 = smul.u32 4, %s31
        %s320 = smul.u32 2, %s33
        %s321 = smul.u32 %s30, 2
        %s322 = sadd.s32 %s321, %s32
        %s323 = smul.u32 4, %s31
        %s324 = smul.u32 2, %s33
        %s325 = smul.u32 4, %s31
        %s326 = smul.u32 4, %s31
        %s327 = smul.u32 4, %s31
        %p328 = scmp.eq.s32.totalorder %s32, 0
        %p329 = scmp.eq.s32.totalorder %s33, 0
        %p330 = pnand %p328, %p329
        %p331 = pneg %p330
        // Predicated region
        $region37: #{tpu_custom_call.1} parent=27 // pred_check
          _
        $region38: #{tpu_custom_call.1} parent=27 // pred_check_branch
          %333 = sbr.rel (%p330) target = $region40
        $region39: #{tpu_custom_call.1} parent=27 // pred_region
          %334 = vst [vmem:[#allocation7] sm:$0xff] 0.0
          %335 = vst [vmem:[#allocation7 + $0x8] sm:$0xff] 0.0
          %336 = vst [vmem:[#allocation7 + $0x10] sm:$0xff] 0.0
          %337 = vst [vmem:[#allocation7 + $0x18] sm:$0xff] 0.0
          %338 = vst [vmem:[#allocation8] sm:$0xff] 0.0
          %339 = vst [vmem:[#allocation8 + $0x8] sm:$0xff] 0.0
          %340 = vst [vmem:[#allocation8 + $0x10] sm:$0xff] 0.0
          %341 = vst [vmem:[#allocation8 + $0x18] sm:$0xff] 0.0
          %342 = vst [vmem:[#allocation10] sm:$0xff] 0.0
          %343 = vst [vmem:[#allocation10 + $0x8] sm:$0xff] 0.0
          %344 = vst [vmem:[#allocation10 + $0x10] sm:$0xff] 0.0
          %345 = vst [vmem:[#allocation10 + $0x18] sm:$0xff] 0.0
        $region40: #{tpu_custom_call.1} parent=27 // pred_fallthru
          _
        %v346 = vld [vmem:[%s283] sm:$0xff]
        %v347 = vld [vmem:[%s283 + $0x8] sm:$0xff]
        %v348 = vld [vmem:[%s283 + $0x10] sm:$0xff]
        %v349 = vld [vmem:[%s283 + $0x18] sm:$0xff]
        %v350 = vld [vmem:[%s283 + $0x20] sm:$0xff]
        %v351 = vld [vmem:[%s283 + $0x28] sm:$0xff]
        %v352 = vld [vmem:[%s283 + $0x30] sm:$0xff]
        %v353 = vld [vmem:[%s283 + $0x38] sm:$0xff]
        %v354 = vxor.u32 %v346, 2147483648
        %v355 = vxor.u32 %v347, 2147483648
        %v356 = vxor.u32 %v348, 2147483648
        %v357 = vxor.u32 %v349, 2147483648
        %v358 = vxor.u32 %v350, 2147483648
        %v359 = vxor.u32 %v351, 2147483648
        %v360 = vxor.u32 %v352, 2147483648
        %v361 = vxor.u32 %v353, 2147483648
        %v362 = vmul.f32 %v354, 1.442695
        %v363 = vpow.pop %v362
        %v364 = vmul.f32 %v355, 1.442695
        %v365 = vpow.pop %v364
        %v366 = vmul.f32 %v356, 1.442695
        %v367 = vpow.pop %v366
        %v368 = vmul.f32 %v357, 1.442695
        %v369 = vpow.pop %v368
        %v370 = vmul.f32 %v358, 1.442695
        %v371 = vpow.pop %v370
        %v372 = vmul.f32 %v359, 1.442695
        %v373 = vpow.pop %v372
        %v374 = vmul.f32 %v360, 1.442695
        %v375 = vpow.pop %v374
        %v376 = vmul.f32 %v361, 1.442695
        %v377 = vpow.pop %v376
        %v378 = vadd.f32 %v363, 1.0
        %v379 = vadd.f32 %v365, 1.0
        %v380 = vadd.f32 %v367, 1.0
        %v381 = vadd.f32 %v369, 1.0
        %v382 = vadd.f32 %v371, 1.0
        %v383 = vadd.f32 %v373, 1.0
        %v384 = vadd.f32 %v375, 1.0
        %v385 = vadd.f32 %v377, 1.0
        %v386 = vrcp.pop %v378
        %v387 = vmul.f32 1.0, %v386
        %v388 = vrcp.pop %v379
        %v389 = vmul.f32 1.0, %v388
        %v390 = vrcp.pop %v380
        %v391 = vmul.f32 1.0, %v390
        %v392 = vrcp.pop %v381
        %v393 = vmul.f32 1.0, %v392
        %v394 = vrcp.pop %v382
        %v395 = vmul.f32 1.0, %v394
        %v396 = vrcp.pop %v383
        %v397 = vmul.f32 1.0, %v396
        %v398 = vrcp.pop %v384
        %v399 = vmul.f32 1.0, %v398
        %v400 = vrcp.pop %v385
        %v401 = vmul.f32 1.0, %v400
        %v402 = vld [vmem:[%s292] sm:$0xf]
        %v403 = vld [vmem:[%s292 + $0x4] sm:$0xf]
        %v404 = vld [vmem:[%s292 + $0x8] sm:$0xf]
        %v405 = vld [vmem:[%s292 + $0xc] sm:$0xf]
        %v406 = vld [vmem:[%s292 + $0x10] sm:$0xf]
        %v407 = vld [vmem:[%s292 + $0x14] sm:$0xf]
        %v408 = vld [vmem:[%s292 + $0x18] sm:$0xf]
        %v409 = vld [vmem:[%s292 + $0x1c] sm:$0xf]
        %v410 = vunpack.c.l.bf16 %v402
        %v411 = vunpack.c.l.bf16 %v403
        %v412 = vunpack.c.l.bf16 %v404
        %v413 = vunpack.c.l.bf16 %v405
        %v414 = vunpack.c.l.bf16 %v406
        %v415 = vunpack.c.l.bf16 %v407
        %v416 = vunpack.c.l.bf16 %v408
        %v417 = vunpack.c.l.bf16 %v409
        %v418 = vld [vmem:[#allocation7] sm:$0xff]
        %v419 = vld [vmem:[#allocation7 + $0x8] sm:$0xff]
        %v420 = vld [vmem:[#allocation7 + $0x10] sm:$0xff]
        %v421 = vld [vmem:[#allocation7 + $0x18] sm:$0xff]
        %v422 = vmul.f32 %v410, %v387
        %v423 = vmul.f32 %v411, %v389
        %v424 = vmul.f32 %v412, %v391
        %v425 = vmul.f32 %v413, %v393
        %v426 = vmul.f32 %v414, %v395
        %v427 = vmul.f32 %v415, %v397
        %v428 = vmul.f32 %v416, %v399
        %v429 = vmul.f32 %v417, %v401
        %v430 = vadd.f32 %v422, %v423
        %v431 = vadd.f32 %v424, %v425
        %v432 = vadd.f32 %v426, %v427
        %v433 = vadd.f32 %v428, %v429
        %v434 = vadd.f32 %v418, %v430
        %v435 = vadd.f32 %v419, %v431
        %v436 = vadd.f32 %v420, %v432
        %v437 = vadd.f32 %v421, %v433
        %438 = vst [vmem:[#allocation7] sm:$0xff] %v434
        %439 = vst [vmem:[#allocation7 + $0x8] sm:$0xff] %v435
        %440 = vst [vmem:[#allocation7 + $0x10] sm:$0xff] %v436
        %441 = vst [vmem:[#allocation7 + $0x18] sm:$0xff] %v437
        %v442 = vld [vmem:[#allocation8] sm:$0xff]
        %v443 = vld [vmem:[#allocation8 + $0x8] sm:$0xff]
        %v444 = vld [vmem:[#allocation8 + $0x10] sm:$0xff]
        %v445 = vld [vmem:[#allocation8 + $0x18] sm:$0xff]
        %v446 = vadd.f32 %v410, %v411
        %v447 = vadd.f32 %v412, %v413
        %v448 = vadd.f32 %v414, %v415
        %v449 = vadd.f32 %v416, %v417
        %v450 = vadd.f32 %v442, %v446
        %v451 = vadd.f32 %v443, %v447
        %v452 = vadd.f32 %v444, %v448
        %v453 = vadd.f32 %v445, %v449
        %454 = vst [vmem:[#allocation8] sm:$0xff] %v450
        %455 = vst [vmem:[#allocation8 + $0x8] sm:$0xff] %v451
        %456 = vst [vmem:[#allocation8 + $0x10] sm:$0xff] %v452
        %457 = vst [vmem:[#allocation8 + $0x18] sm:$0xff] %v453
        %v458 = vld [vmem:[#allocation10] sm:$0xff]
        %v459 = vld [vmem:[#allocation10 + $0x8] sm:$0xff]
        %v460 = vld [vmem:[#allocation10 + $0x10] sm:$0xff]
        %v461 = vld [vmem:[#allocation10 + $0x18] sm:$0xff]
        %v462 = vadd.f32 %v387, %v389
        %v463 = vadd.f32 %v391, %v393
        %v464 = vadd.f32 %v395, %v397
        %v465 = vadd.f32 %v399, %v401
        %v466 = vadd.f32 %v458, %v462
        %v467 = vadd.f32 %v459, %v463
        %v468 = vadd.f32 %v460, %v464
        %v469 = vadd.f32 %v461, %v465
        %470 = vst [vmem:[#allocation10] sm:$0xff] %v466
        %471 = vst [vmem:[#allocation10 + $0x8] sm:$0xff] %v467
        %472 = vst [vmem:[#allocation10 + $0x10] sm:$0xff] %v468
        %473 = vst [vmem:[#allocation10 + $0x18] sm:$0xff] %v469
        // Predicated region
        $region41: #{tpu_custom_call.1} parent=27 // pred_check
          %p474 = pneg %p138
        $region42: #{tpu_custom_call.1} parent=27 // pred_check_branch
          %476 = sbr.rel (%p474) target = $region44
        $region43: #{tpu_custom_call.1} parent=27 // pred_region
          %s477 = smul.u32 4, %s31
          %s479 = ssub.s32 512, 512
          %480 = vsyncadd [#allocation4], %s479
          %s481 = smul.addr %s30, 4
          %s482 = sadd.s32 %s477, %s481
          %s483 = smul.addr %s482, 128
          %s484 = scalar_lea.hbm %s2, %s483
          %s485 = sshll.u32 [#allocation7], 4
          %s486 = int_to_ptr.vmem [resolvable:$true] %s485
          %491 = dma.vmem_to_hbm [thread:$0]  %s486, 512, %s484, [#allocation4], 128, 128, 8
        $region44: #{tpu_custom_call.1} parent=27 // pred_fallthru
          _
        // Predicated region
        $region45: #{tpu_custom_call.1} parent=27 // pred_check
          %p492 = pneg %p166
        $region46: #{tpu_custom_call.1} parent=27 // pred_check_branch
          %494 = sbr.rel (%p492) target = $region48
        $region47: #{tpu_custom_call.1} parent=27 // pred_region
          %s495 = smul.u32 4, %s31
          %s497 = ssub.s32 512, 512
          %498 = vsyncadd [#allocation9], %s497
          %s499 = smul.addr %s30, 4
          %s500 = sadd.s32 %s495, %s499
          %s501 = smul.addr %s500, 128
          %s502 = scalar_lea.hbm %s3, %s501
          %s503 = sshll.u32 [#allocation8], 4
          %s504 = int_to_ptr.vmem [resolvable:$true] %s503
          %509 = dma.vmem_to_hbm [thread:$0]  %s504, 512, %s502, [#allocation9], 128, 128, 8
        $region48: #{tpu_custom_call.1} parent=27 // pred_fallthru
          _
        // Predicated region
        $region49: #{tpu_custom_call.1} parent=27 // pred_check
          %p510 = pneg %p194
        $region50: #{tpu_custom_call.1} parent=27 // pred_check_branch
          %512 = sbr.rel (%p510) target = $region52
        $region51: #{tpu_custom_call.1} parent=27 // pred_region
          %s513 = smul.u32 4, %s31
          %s515 = ssub.s32 512, 512
          %516 = vsyncadd [#allocation9], %s515
          %s517 = smul.addr %s30, 4
          %s518 = sadd.s32 %s513, %s517
          %s519 = smul.addr %s518, 128
          %s520 = scalar_lea.hbm %s4, %s519
          %s521 = sshll.u32 [#allocation10], 4
          %s522 = int_to_ptr.vmem [resolvable:$true] %s521
          %527 = dma.vmem_to_hbm [thread:$0]  %s522, 512, %s520, [#allocation9], 128, 128, 8
        $region52: #{tpu_custom_call.1} parent=27 // pred_fallthru
          _
        // Predicated region
        $region53: #{tpu_custom_call.1} parent=27 // pred_check
          %p528 = pneg %p138
        $region54: #{tpu_custom_call.1} parent=27 // pred_check_branch
          %530 = sbr.rel (%p528) target = $region56
        $region55: #{tpu_custom_call.1} parent=27 // pred_region
          %531 = dma.done [#allocation4], 512
        $region56: #{tpu_custom_call.1} parent=27 // pred_fallthru
          _
        // Predicated region
        $region57: #{tpu_custom_call.1} parent=27 // pred_check
          %p532 = pneg %p166
        $region58: #{tpu_custom_call.1} parent=27 // pred_check_branch
          %534 = sbr.rel (%p532) target = $region60
        $region59: #{tpu_custom_call.1} parent=27 // pred_region
          %535 = dma.done [#allocation9], 512
        $region60: #{tpu_custom_call.1} parent=27 // pred_fallthru
          _
        // Predicated region
        $region61: #{tpu_custom_call.1} parent=27 // pred_check
          %p536 = pneg %p194
        $region62: #{tpu_custom_call.1} parent=27 // pred_check_branch
          %538 = sbr.rel (%p536) target = $region64
        $region63: #{tpu_custom_call.1} parent=27 // pred_region
          %539 = dma.done [#allocation9], 512
        $region64: #{tpu_custom_call.1} parent=27 // pred_fallthru
          _
      $region28: #{tpu_custom_call.1} parent=5 // pred_fallthru
        _
      %p540 = scmp.le.s32.totalorder 2, %s19
      // Predicated region
      $region65: #{tpu_custom_call.1} parent=5 // pred_check
        %p541 = pneg %p540
      $region66: #{tpu_custom_call.1} parent=5 // pred_check_branch
        %543 = sbr.rel (%p541) target = $region68
      $region67: #{tpu_custom_call.1} parent=5 // pred_region
        %s544 = ssub.s32 %s19, 2
      $region68: #{tpu_custom_call.1} parent=5 // pred_fallthru
        _
    $region6: #{tpu_custom_call.1} parent=1 // loop_footer
      %s23 = sadd.s32 1, %s19
    $region7: #{tpu_custom_call.1} parent=1 // loop_footer_branch
      %18 = sbr.rel target = $region3
    $region8: #{tpu_custom_call.1} parent=1 // loop_exit
      _
    %545 = vsyncpa [#allocation3], 1
    %s546 = scalar_lea.sflag [#allocation3], 1
    %547 = vsyncpa %s546, 1
    %548 = vsyncpa [#allocation6], 1
    %s549 = scalar_lea.sflag [#allocation6], 1
    %550 = vsyncpa %s549, 1
    %551 = vsyncpa [#allocation4], 1
    %s552 = scalar_lea.sflag [#allocation4], 1
    %553 = vsyncpa %s552, 1
    %554 = vsyncpa [#allocation9], 1

</llo_original>
